<compile_context>
chip_gen: v6e
topology: v6e:2x2x1
jax: 0.10.0
libtpu: 0.0.40
codegen_flags: <defaults>
</compile_context>

<pallas_src>
import jax
import jax.numpy as jnp
from jax.experimental import pallas as pl
from jax.experimental.pallas import tpu as pltpu


def head_kernel(feats_ref, w_ref, b_ref, out_ref):
    # feats_ref: (TB, HW, C) bf16  -- C on the lane axis (dense)
    # w_ref:     (C, NC_PAD) f32   -- resident across grid steps
    # b_ref:     (1, NC_PAD) f32
    # out_ref:   (TB, NC_PAD) f32  -- lane-dense output block
    hw = feats_ref.shape[1]
    # F.relu in the streamed dtype (1 VPU op/element), upcast only for the
    # spatial accumulation.
    x = jnp.maximum(feats_ref[...], 0)                       # bf16
    pooled = jnp.sum(x.astype(jnp.float32), axis=1)          # (TB, C) f32
    pooled = pooled * (1.0 / hw)                              # adaptive_avg_pool2d((1,1))
    logits = jnp.dot(pooled, w_ref[...],
                     preferred_element_type=jnp.float32) + b_ref[...]
    out_ref[...] = jax.nn.sigmoid(logits).astype(out_ref.dtype)  # nn.Sigmoid


def custom_model3_head(feats_nhwc, w, b, *, tb=32):
    """Fused relu + global-avg-pool + Linear + Sigmoid head.

    feats_nhwc: [B, H, W, C] backbone feature map (bf16 preferred; C on lanes).
    w:          [C, num_classes]  (pre-transposed PyTorch Linear weight).
    b:          [num_classes].
    tb:         batch tile (suggested: 16 on v5e, 32 on v6e, 64 on v7x).
    """
    B, H, W, C = feats_nhwc.shape
    HW = H * W
    NC = w.shape[1]
    NC_PAD = ((NC + 127) // 128) * 128          # lane-dense matmul-N / output

    # Free view (no data movement): NHWC -> [B, HW, C]; C stays on the lane axis.
    feats = feats_nhwc.reshape(B, HW, C)

    # Zero-pad classifier params to a lane-dense N (sigmoid(0)=0.5 in the pad
    # columns, sliced off below).
    w_pad = jnp.zeros((C, NC_PAD), dtype=jnp.float32).at[:, :NC].set(
        w.astype(jnp.float32))
    b_pad = jnp.zeros((1, NC_PAD), dtype=jnp.float32).at[0, :NC].set(
        b.astype(jnp.float32))

    TB = max(1, min(tb, B))
    grid = (pl.cdiv(B, TB),)

    # --- VMEM budget (honest, padded sizes) -------------------------------
    itemsize = jnp.dtype(feats.dtype).itemsize
    hw_pad = ((HW + 7) // 8) * 8                 # sublane padding
    c_lane = max(128, ((C + 127) // 128) * 128)  # lane padding of C
    tb_pad = ((TB + 7) // 8) * 8
    feat_tile = TB * hw_pad * c_lane * itemsize
    out_tile = tb_pad * NC_PAD * 4
    w_bytes = (((C + 7) // 8) * 8) * NC_PAD * 4
    b_bytes = 8 * NC_PAD * 4
    vmem_need = (2 * feat_tile + 2 * out_tile     # double-buffered in/out
                 + 2 * (w_bytes + b_bytes)        # resident params (+buffering)
                 + (4 << 20))                     # headroom
    vmem_limit = int(min(max(vmem_need, 32 << 20), 64 << 20))

    cost = pl.CostEstimate(
        flops=2 * B * HW * C + 2 * B * C * NC_PAD,       # relu+sum, matmul
        transcendentals=B * NC_PAD,                      # sigmoid
        bytes_accessed=(B * HW * C * itemsize
                        + (C * NC_PAD + NC_PAD) * 4
                        + B * NC_PAD * 4),
    )

    out = pl.pallas_call(
        head_kernel,
        out_shape=jax.ShapeDtypeStruct((B, NC_PAD), jnp.float32),
        grid=grid,
        in_specs=[
            # Feature tile: batch-tiled, full (HW, C) per step, C lane-dense.
            pl.BlockSpec((TB, HW, C), lambda i: (i, 0, 0)),
            # Classifier weight / bias: same block every step -> stays resident.
            pl.BlockSpec((C, NC_PAD), lambda i: (0, 0)),
            pl.BlockSpec((1, NC_PAD), lambda i: (0, 0)),
        ],
        out_specs=pl.BlockSpec((TB, NC_PAD), lambda i: (i, 0)),
        compiler_params=pltpu.CompilerParams(
            dimension_semantics=("parallel",),
            vmem_limit_bytes=vmem_limit,
        ),
        cost_estimate=cost,
    )(feats, w_pad, b_pad)

    return out[:, :NC]


if __name__ == "__main__":
    # Small synthetic shapes: batch=2, backbone channels (classifier.in_features)=32,
    # spatial 8x8 feature map, num_classes=14 (module default).
    B, C, H, W = 2, 32, 8, 8
    num_classes = 14

    key = jax.random.PRNGKey(0)
    k_feat, k_w, k_b = jax.random.split(key, 3)

    # Backbone output in NHWC (TPU-native conv layout), kept in bf16 so the
    # memory-bound head streams half the HBM bytes.
    feats = jax.random.normal(k_feat, (B, H, W, C),
                              dtype=jnp.float32).astype(jnp.bfloat16)

    # Linear layer params (PyTorch stores weight as [out, in]; keep pre-transposed
    # as [in, out] so the kernel does pooled @ w).
    bound = 1.0 / jnp.sqrt(C)
    w = jax.random.uniform(k_w, (C, num_classes), minval=-bound, maxval=bound,
                           dtype=jnp.float32)
    b = jax.random.uniform(k_b, (num_classes,), minval=-bound, maxval=bound,
                           dtype=jnp.float32)

    out = custom_model3_head(feats, w, b)
    out = jax.block_until_ready(out)

    # Reference check (pure JAX) of the head semantics on the same bf16 features.
    feats_f32 = feats.astype(jnp.float32)
    ref = jax.nn.sigmoid(
        jnp.mean(jnp.maximum(feats_f32, 0.0), axis=(1, 2)) @ w + b
    )
    assert out.shape == (B, num_classes)
    assert jnp.allclose(out, ref, atol=2e-3, rtol=2e-3), (
        f"max abs err {jnp.max(jnp.abs(out - ref))}")

    print("KERNEL_OK")
</pallas_src>

<mosaic_0001>
module attributes {stable_mosaic.version = 11 : i64} {
  func.func @head_kernel(%arg0: i32, %arg1: memref<2x64x32xbf16, #tpu.memory_space<vmem>>, %arg2: memref<32x128xf32, #tpu.memory_space<vmem>>, %arg3: memref<1x128xf32, #tpu.memory_space<vmem>>, %arg4: memref<2x128xf32, #tpu.memory_space<vmem>>) attributes {dimension_semantics = [#tpu.dimension_semantics<parallel>], iteration_bounds = array<i64: 1>, scalar_prefetch = 0 : i64, scratch_operands = 0 : i64, tpu.core_type = #tpu.core_type<tc>, window_params = [{transform_indices = @transform_0, window_bounds = array<i64: 2, 64, 32>}, {pipeline_mode = #tpu.pipeline_mode<synchronous>, transform_indices = @transform_1, window_bounds = array<i64: 32, 128>}, {pipeline_mode = #tpu.pipeline_mode<synchronous>, transform_indices = @transform_2, window_bounds = array<i64: 1, 128>}, {transform_indices = @transform_3, window_bounds = array<i64: 2, 128>}]} {
    %c0 = arith.constant 0 : index
    %c0_0 = arith.constant 0 : index
    %c0_1 = arith.constant 0 : index
    %0 = vector.load %arg1[%c0, %c0_0, %c0_1] : memref<2x64x32xbf16, #tpu.memory_space<vmem>>, vector<2x64x32xbf16>
    %cst = arith.constant 0.000000e+00 : bf16
    %1 = vector.broadcast %cst : bf16 to vector<2x64x32xbf16>
    %2 = arith.maximumf %0, %1 : vector<2x64x32xbf16>
    %3 = arith.extf %2 : vector<2x64x32xbf16> to vector<2x64x32xf32>
    %cst_2 = arith.constant dense<0.000000e+00> : vector<2x32xf32>
    %4 = vector.multi_reduction <add>, %3, %cst_2 [1] : vector<2x64x32xf32> to vector<2x32xf32>
    %cst_3 = arith.constant 1.562500e-02 : f32
    %5 = vector.broadcast %cst_3 : f32 to vector<2x32xf32>
    %6 = arith.mulf %4, %5 : vector<2x32xf32>
    %c0_4 = arith.constant 0 : index
    %c0_5 = arith.constant 0 : index
    %7 = vector.load %arg2[%c0_4, %c0_5] : memref<32x128xf32, #tpu.memory_space<vmem>>, vector<32x128xf32>
    %cst_6 = arith.constant dense<0.000000e+00> : vector<2x128xf32>
    %8 = tpu.matmul %6, %7, %cst_6 {dimension_numbers = #tpu.dot_dimension_numbers<[1], [0], [0], [1], [0, 0, 1, 1], [], []>} : vector<2x32xf32>, vector<32x128xf32>, vector<2x128xf32> -> vector<2x128xf32>
    %c0_7 = arith.constant 0 : index
    %c0_8 = arith.constant 0 : index
    %9 = vector.load %arg3[%c0_7, %c0_8] : memref<1x128xf32, #tpu.memory_space<vmem>>, vector<1x128xf32>
    %10 = vector.broadcast %9 : vector<1x128xf32> to vector<2x128xf32>
    %11 = arith.addf %8, %10 : vector<2x128xf32>
    %12 = arith.negf %11 : vector<2x128xf32>
    %13 = math.exp %12 : vector<2x128xf32>
    %cst_9 = arith.constant 1.000000e+00 : f32
    %14 = vector.broadcast %cst_9 : f32 to vector<2x128xf32>
    %15 = arith.addf %14, %13 : vector<2x128xf32>
    %16 = arith.divf %14, %15 : vector<2x128xf32>
    %c0_10 = arith.constant 0 : index
    %c0_11 = arith.constant 0 : index
    %17 = vector.load %arg4[%c0_10, %c0_11] : memref<2x128xf32, #tpu.memory_space<vmem>>, vector<2x128xf32>
    tpu.vector_store %arg4[%c0_10, %c0_11], %16 {strides = array<i32>} : memref<2x128xf32, #tpu.memory_space<vmem>>, vector<2x128xf32>,
    return
  }
  func.func @transform_0(%arg0: i32) -> (i32, i32, i32) {
    %c0_i32 = arith.constant 0 : i32
    %c0_i32_0 = arith.constant 0 : i32
    %c0_i32_1 = arith.constant 0 : i32
    return %arg0, %c0_i32, %c0_i32_0 : i32, i32, i32
  }
  func.func @transform_1(%arg0: i32) -> (i32, i32) {
    %c0_i32 = arith.constant 0 : i32
    %c0_i32_0 = arith.constant 0 : i32
    %c0_i32_1 = arith.constant 0 : i32
    return %c0_i32, %c0_i32_0 : i32, i32
  }
  func.func @transform_2(%arg0: i32) -> (i32, i32) {
    %c0_i32 = arith.constant 0 : i32
    %c0_i32_0 = arith.constant 0 : i32
    %c0_i32_1 = arith.constant 0 : i32
    return %c0_i32, %c0_i32_0 : i32, i32
  }
  func.func @transform_3(%arg0: i32) -> (i32, i32) {
    %c0_i32 = arith.constant 0 : i32
    %c0_i32_0 = arith.constant 0 : i32
    return %arg0, %c0_i32 : i32, i32
  }
}

</mosaic_0001>

<llo_original>
// kernel: tpu_custom_call.1
$region0: #{tpu_custom_call.1}
  #allocation0 [shape = 'u32[]', space=smem, size = 0x4, offset = 0x4, fixed_abs, tag = 'smem constant byte address 0x4 - core index']
  #allocation1 [shape = 'u32[144,128]{1,0:T(1,128)}', space=vmem, size = 0x12000, scoped, tag = 'internal scratch']
  %s0 = inlined_call_operand.vmem [shape: bf16[2,64,32], index: 0, kind: input, shape index: {}]
  %s1 = inlined_call_operand.vmem [shape: f32[32,128], index: 1, kind: input, shape index: {}]
  %s2 = inlined_call_operand.vmem [shape: f32[1,128], index: 2, kind: input, shape index: {}]
  %s3 = inlined_call_operand.hbm [shape: f32[2,128], index: 3, kind: output, shape index: {}]
  %s4 = sld [smem:[#allocation0]]
  $region22: #{tpu_custom_call.1} parent=0
    _
  %s6 = ssub.s32 1, %s4
  %s7 = scalar_select 0, %s6, %s4
  $region1: #{tpu_custom_call.1} parent=0
    #allocation2 [shape = 'u8[1024]{0}', space=vmem, size = 0x400, scoped, tag = 'output window, operand 0, single buffered']
    #allocation3 [shape = 's32[1]{0}', space=sflag, size = 0x4, scoped, tag = 'scoped memory for tpu_custom_call.1']
    %8 = vsyncpa [#allocation3], 0
    // Predicated region
    $region2: #{tpu_custom_call.1} parent=1 // pred_check
      _
    $region3: #{tpu_custom_call.1} parent=1 // pred_check_branch
      %10 = sbr.rel (0) target = $region5
    $region4: #{tpu_custom_call.1} parent=1 // pred_region
      _
    $region5: #{tpu_custom_call.1} parent=1 // pred_fallthru
      _
    // Predicated region
    $region6: #{tpu_custom_call.1} parent=1 // pred_check
      _
    $region7: #{tpu_custom_call.1} parent=1 // pred_check_branch
      %12 = sbr.rel (0) target = $region9
    $region8: #{tpu_custom_call.1} parent=1 // pred_region
      _
    $region9: #{tpu_custom_call.1} parent=1 // pred_fallthru
      _
    // Predicated region
    $region10: #{tpu_custom_call.1} parent=1 // pred_check
      _
    $region11: #{tpu_custom_call.1} parent=1 // pred_check_branch
      %14 = sbr.rel (0) target = $region13
    $region12: #{tpu_custom_call.1} parent=1 // pred_region
      _
    $region13: #{tpu_custom_call.1} parent=1 // pred_fallthru
      _
    %v16 = vld [vmem:[%s0] sm:$0xf]
    %v17 = vld [vmem:[%s0 + $0x4] sm:$0xf]
    %v18 = vld [vmem:[%s0 + $0x8] sm:$0xf]
    %v19 = vld [vmem:[%s0 + $0xc] sm:$0xf]
    %v20 = vld [vmem:[%s0 + $0x10] sm:$0xf]
    %v21 = vld [vmem:[%s0 + $0x14] sm:$0xf]
    %v22 = vld [vmem:[%s0 + $0x18] sm:$0xf]
    %v23 = vld [vmem:[%s0 + $0x1c] sm:$0xf]
    %v24 = vld [vmem:[%s0 + $0x20] sm:$0xf]
    %v25 = vld [vmem:[%s0 + $0x24] sm:$0xf]
    %v26 = vld [vmem:[%s0 + $0x28] sm:$0xf]
    %v27 = vld [vmem:[%s0 + $0x2c] sm:$0xf]
    %v28 = vld [vmem:[%s0 + $0x30] sm:$0xf]
    %v29 = vld [vmem:[%s0 + $0x34] sm:$0xf]
    %v30 = vld [vmem:[%s0 + $0x38] sm:$0xf]
    %v31 = vld [vmem:[%s0 + $0x3c] sm:$0xf]
    %v32 = vmax.bf16 %v16, 0
    %v33 = vmax.bf16 %v17, 0
    %v34 = vmax.bf16 %v18, 0
    %v35 = vmax.bf16 %v19, 0
    %v36 = vmax.bf16 %v20, 0
    %v37 = vmax.bf16 %v21, 0
    %v38 = vmax.bf16 %v22, 0
    %v39 = vmax.bf16 %v23, 0
    %v40 = vmax.bf16 %v24, 0
    %v41 = vmax.bf16 %v25, 0
    %v42 = vmax.bf16 %v26, 0
    %v43 = vmax.bf16 %v27, 0
    %v44 = vmax.bf16 %v28, 0
    %v45 = vmax.bf16 %v29, 0
    %v46 = vmax.bf16 %v30, 0
    %v47 = vmax.bf16 %v31, 0
    %v48 = vunpack.c.l.bf16 %v32
    %v49 = vunpack.c.l.bf16 %v33
    %v50 = vunpack.c.l.bf16 %v34
    %v51 = vunpack.c.l.bf16 %v35
    %v52 = vunpack.c.l.bf16 %v36
    %v53 = vunpack.c.l.bf16 %v37
    %v54 = vunpack.c.l.bf16 %v38
    %v55 = vunpack.c.l.bf16 %v39
    %v56 = vunpack.c.l.bf16 %v40
    %v57 = vunpack.c.l.bf16 %v41
    %v58 = vunpack.c.l.bf16 %v42
    %v59 = vunpack.c.l.bf16 %v43
    %v60 = vunpack.c.l.bf16 %v44
    %v61 = vunpack.c.l.bf16 %v45
    %v62 = vunpack.c.l.bf16 %v46
    %v63 = vunpack.c.l.bf16 %v47
    %vm64 = vcmask 261120
    %v65 = vsel %vm64, %v48, 0.0
    %v66 = vsel %vm64, %v49, 0.0
    %v67 = vadd.f32 %v65, %v66
    %v68 = vsel %vm64, %v50, 0.0
    %v69 = vadd.f32 %v67, %v68
    %v70 = vsel %vm64, %v51, 0.0
    %v71 = vadd.f32 %v69, %v70
    %v72 = vsel %vm64, %v52, 0.0
    %v73 = vadd.f32 %v71, %v72
    %v74 = vsel %vm64, %v53, 0.0
    %v75 = vadd.f32 %v73, %v74
    %v76 = vsel %vm64, %v54, 0.0
    %v77 = vadd.f32 %v75, %v76
    %v78 = vsel %vm64, %v55, 0.0
    %v79 = vadd.f32 %v77, %v78
    %v80 = vrot.slane %v79, 4
    %v81 = vadd.f32 %v79, %v80
    %v82 = vrot.slane %v81, 2
    %v83 = vadd.f32 %v81, %v82
    %v84 = vrot.slane %v83, 1
    %v85 = vadd.f32 %v83, %v84
    %v86 = vsel %vm64, %v56, 0.0
    %v87 = vsel %vm64, %v57, 0.0
    %v88 = vadd.f32 %v86, %v87
    %v89 = vsel %vm64, %v58, 0.0
    %v90 = vadd.f32 %v88, %v89
    %v91 = vsel %vm64, %v59, 0.0
    %v92 = vadd.f32 %v90, %v91
    %v93 = vsel %vm64, %v60, 0.0
    %v94 = vadd.f32 %v92, %v93
    %v95 = vsel %vm64, %v61, 0.0
    %v96 = vadd.f32 %v94, %v95
    %v97 = vsel %vm64, %v62, 0.0
    %v98 = vadd.f32 %v96, %v97
    %v99 = vsel %vm64, %v63, 0.0
    %v100 = vadd.f32 %v98, %v99
    %v101 = vrot.slane %v100, 4
    %v102 = vadd.f32 %v100, %v101
    %v103 = vrot.slane %v102, 2
    %v104 = vadd.f32 %v102, %v103
    %v105 = vrot.slane %v104, 1
    %v106 = vadd.f32 %v104, %v105
    %v107 = vmul.f32 %v85, 0.015625
    %v108 = vmul.f32 %v106, 0.015625
    %v109 = vld [vmem:[%s1] sm:$0xff]
    %v110 = vld [vmem:[%s1 + $0x8] sm:$0xff]
    %v111 = vld [vmem:[%s1 + $0x10] sm:$0xff]
    %v112 = vld [vmem:[%s1 + $0x18] sm:$0xff]
    %v113 = vld [vmem:[%s2] sm:$0x1]
    %v115 = vlaneseq
    %v116 = vshrl.u32 %v115, 7
    %v117 = vsub.s32 0, %v116
    %v118 = vrot.slane %v113, %v117
    %vm122 = vcmask 1041409
    %v123 = vsel %vm122, %v108, %v107
    %v124 = vsel %vm64, %v123, 0
    %126 = vmatprep.subr.mxu0 0.0
    %127 = vmatpush1.msra.mxu0 0.0
    %128 = vmatprep.subr.mxu0 0.0
    %129 = vmatpush1.msra.mxu0 0.0
    %130 = vmatprep.subr.mxu0 0.0
    %131 = vmatpush1.msra.mxu0 0.0
    %132 = vmatprep.subr.mxu0 0.0
    %133 = vmatpush1.msra.mxu0 0.0
    %134 = vmatprep.subr.mxu0 0.0
    %135 = vmatpush1.msra.mxu0 0.0
    %136 = vmatprep.subr.mxu0 0.0
    %137 = vmatpush1.msra.mxu0 0.0
    %138 = vmatprep.subr.mxu0 0.0
    %139 = vmatpush1.msra.mxu0 0.0
    %140 = vmatprep.subr.mxu0 0.0
    %141 = vmatpush1.msra.mxu0 0.0
    %142 = vmatprep.subr.mxu0 0.0
    %143 = vmatpush1.msra.mxu0 0.0
    %144 = vmatprep.subr.mxu0 0.0
    %145 = vmatpush1.msra.mxu0 0.0
    %146 = vmatprep.subr.mxu0 0.0
    %147 = vmatpush1.msra.mxu0 0.0
    %148 = vmatprep.subr.mxu0 0.0
    %149 = vmatpush1.msra.mxu0 0.0
    %150 = vmatprep.subr.mxu0 0.0
    %151 = vmatpush1.msra.mxu0 %v112
    %152 = vmatprep.subr.mxu0 0.0
    %153 = vmatpush1.msra.mxu0 %v111
    %154 = vmatprep.subr.mxu0 0.0
    %155 = vmatpush1.msra.mxu0 %v110
    %156 = vmatprep.subr.mxu0 0.0
    %157 = vmatpush1.msra.mxu0 %v109
    %158 = vmatprep.subr.mxu0 0.0
    %159 = vmatpush2.msra.mxu0 0.0
    %160 = vmatprep.subr.mxu0 0.0
    %161 = vmatpush2.msra.mxu0 0.0
    %162 = vmatprep.subr.mxu0 0.0
    %163 = vmatpush2.msra.mxu0 0.0
    %164 = vmatprep.subr.mxu0 0.0
    %165 = vmatpush2.msra.mxu0 0.0
    %166 = vmatprep.subr.mxu0 0.0
    %167 = vmatpush2.msra.mxu0 0.0
    %168 = vmatprep.subr.mxu0 0.0
    %169 = vmatpush2.msra.mxu0 0.0
    %170 = vmatprep.subr.mxu0 0.0
    %171 = vmatpush2.msra.mxu0 0.0
    %172 = vmatprep.subr.mxu0 0.0
    %173 = vmatpush2.msra.mxu0 0.0
    %174 = vmatprep.subr.mxu0 0.0
    %175 = vmatpush2.msra.mxu0 0.0
    %176 = vmatprep.subr.mxu0 0.0
    %177 = vmatpush2.msra.mxu0 0.0
    %178 = vmatprep.subr.mxu0 0.0
    %179 = vmatpush2.msra.mxu0 0.0
    %180 = vmatprep.subr.mxu0 0.0
    %181 = vmatpush2.msra.mxu0 0.0
    %182 = vmatprep.subr.mxu0 0.0
    %183 = vmatpush2.msra.mxu0 0.0
    %184 = vmatprep.subr.mxu0 0.0
    %185 = vmatpush2.msra.mxu0 0.0
    %186 = vmatprep.subr.mxu0 0.0
    %187 = vmatpush2.msra.mxu0 0.0
    %188 = vmatprep.subr.mxu0 0.0
    %189 = vmatpush2.msra.mxu0 0.0
    %190 = vmatprep.mubr.f32.mxu0 0.0
    %191 = vmatmul.mubr.f32.gmra.mxu0 %v124
    %v192 = vpop.f32.mrf.mxu0
    %v193 = vadd.f32 %v118, %v192
    %v194 = vpop.f32.mrf.mxu0
    %195 = vdwg.mxu0
    %v196 = vxor.u32 %v193, 2147483648
    %v197 = vmul.f32 %v196, 1.442695
    %v198 = vpow.pop %v197
    %v199 = vadd.f32 %v198, 1.0
    %v200 = vrcp.pop %v199
    %v201 = vmul.f32 1.0, %v200
    %202 = vst [vmem:[#allocation2] sm:$0x3] %v201
    // Predicated region
    $region14: #{tpu_custom_call.1} parent=1 // pred_check
      _
    $region15: #{tpu_custom_call.1} parent=1 // pred_check_branch
      %204 = sbr.rel (0) target = $region17
    $region16: #{tpu_custom_call.1} parent=1 // pred_region
      %s206 = ssub.s32 32, 32
      %207 = vsyncadd [#allocation3], %s206
      %s209 = sshll.u32 [#allocation2], 4
      %s210 = int_to_ptr.vmem [resolvable:$true] %s209
      %212 = dma.vmem_to_hbm [thread:$0]  %s210, 32, %s3, [#allocation3]
    $region17: #{tpu_custom_call.1} parent=1 // pred_fallthru
      _
    // Predicated region
    $region18: #{tpu_custom_call.1} parent=1 // pred_check
      _
    $region19: #{tpu_custom_call.1} parent=1 // pred_check_branch
      %214 = sbr.rel (0) target = $region21
    $region20: #{tpu_custom_call.1} parent=1 // pred_region
      %215 = dma.done [#allocation3], 32
    $region21: #{tpu_custom_call.1} parent=1 // pred_fallthru
      _
    %216 = vsyncpa [#allocation3], 1

</llo_original>
